<compile_context>
chip_gen: v7x
topology: tpu7x:2x2x1
jax: 0.10.0
libtpu: 0.0.40
codegen_flags: <defaults>
</compile_context>

<pallas_src>
import jax
import jax.numpy as jnp
from jax.experimental import pallas as pl
from jax.experimental.pallas import tpu as pltpu

_K = 100  # hidden width of h rows
_N = 6    # output width per row


def g_kernel(bias_ref, h_ref, wt_ref, o_ref):
    # bias_ref: SMEM (1,) scalar; h_ref: (TM, 100); wt_ref: (100, 6); o_ref: (TM, 6)
    acc = (
        jnp.dot(h_ref[...], wt_ref[...], preferred_element_type=jnp.float32)
        + bias_ref[0]
    )
    o_ref[...] = jnp.tanh(acc).astype(o_ref.dtype)


def g_forward(h, Wg1, Wg2, bias, *, tm=4096):
    """Pallas implementation of G.forward.

    h:    (..., 100) -> internally flattened to (M, 100); requires M % 6 == 0
    Wg1:  (6, 100)
    Wg2:  (6, 100)
    bias: (1,)
    returns (M // 6, 6, 6)
    """
    h2d = h.reshape(-1, _K).astype(jnp.float32)
    M = h2d.shape[0]
    assert M % _N == 0, f"flattened row count {M} must be divisible by {_N}"

    # Fold the two weight matrices once on the host side of the call.
    wt = (Wg1 + Wg2).T.astype(jnp.float32)  # (100, 6)
    bias = bias.astype(jnp.float32)

    # Tile size: full array for small M (keeps (8,128) rules satisfied since a
    # full-dim block is always legal); otherwise a large multiple-of-8 tile so
    # the pipeline runs at HBM roofline while staying well inside scoped VMEM.
    TM = M if M <= tm else tm
    grid = (pl.cdiv(M, TM),)

    out2d = pl.pallas_call(
        g_kernel,
        out_shape=jax.ShapeDtypeStruct((M, _N), jnp.float32),
        grid=grid,
        in_specs=[
            pl.BlockSpec(memory_space=pltpu.SMEM),           # bias (scalar)
            pl.BlockSpec((TM, _K), lambda i: (i, 0)),         # h tile
            pl.BlockSpec((_K, _N), lambda i: (0, 0)),         # folded W.T (resident)
        ],
        out_specs=pl.BlockSpec((TM, _N), lambda i: (i, 0)),
        compiler_params=pltpu.CompilerParams(
            dimension_semantics=("parallel",)
        ),
    )(bias, h2d, wt)

    return out2d.reshape(-1, _N, _N)


def g_forward_ref(h, Wg1, Wg2, bias):
    """Pure-JAX reference mirroring the PyTorch module."""
    h2d = h.reshape(-1, _K)
    r = h2d @ Wg1.T + h2d @ Wg2.T + bias
    return jnp.tanh(r).reshape(-1, _N, _N)


if __name__ == "__main__":
    key = jax.random.PRNGKey(0)
    k_h, k_w1, k_w2, k_b = jax.random.split(key, 4)

    # Small deterministic example: batch=2 -> (2, 6, 100), flattened M=12 rows
    # (divisible by 6 as required by view(-1, 6, 6)).
    h = jax.random.normal(k_h, (2, 6, 100), dtype=jnp.float32)

    # Module __init__ uses zeros; use small random values so the check is
    # non-trivial.
    Wg1 = 0.05 * jax.random.normal(k_w1, (6, 100), dtype=jnp.float32)
    Wg2 = 0.05 * jax.random.normal(k_w2, (6, 100), dtype=jnp.float32)
    bias = 0.05 * jax.random.normal(k_b, (1,), dtype=jnp.float32)

    out = g_forward(h, Wg1, Wg2, bias)
    out = jax.block_until_ready(out)

    ref = g_forward_ref(h, Wg1, Wg2, bias)
    assert out.shape == (2, 6, 6), out.shape
    assert jnp.allclose(out, ref, atol=1e-5, rtol=1e-5), "mismatch vs reference"

    print("KERNEL_OK")
</pallas_src>

<mosaic_0001>
module attributes {stable_mosaic.version = 11 : i64} {
  func.func @g_kernel(%arg0: i32, %arg1: memref<1xf32, #tpu.memory_space<smem>>, %arg2: memref<12x100xf32, #tpu.memory_space<vmem>>, %arg3: memref<100x6xf32, #tpu.memory_space<vmem>>, %arg4: memref<12x6xf32, #tpu.memory_space<vmem>>) attributes {dimension_semantics = [#tpu.dimension_semantics<parallel>], iteration_bounds = array<i64: 1>, scalar_prefetch = 0 : i64, scratch_operands = 0 : i64, tpu.core_type = #tpu.core_type<tc>, window_params = [{transform_indices = @transform_0, window_bounds = array<i64: 1>}, {transform_indices = @transform_1, window_bounds = array<i64: 12, 100>}, {pipeline_mode = #tpu.pipeline_mode<synchronous>, transform_indices = @transform_2, window_bounds = array<i64: 100, 6>}, {transform_indices = @transform_3, window_bounds = array<i64: 12, 6>}]} {
    %c0 = arith.constant 0 : index
    %c0_0 = arith.constant 0 : index
    %0 = vector.load %arg2[%c0, %c0_0] : memref<12x100xf32, #tpu.memory_space<vmem>>, vector<12x100xf32>
    %c0_1 = arith.constant 0 : index
    %c0_2 = arith.constant 0 : index
    %1 = vector.load %arg3[%c0_1, %c0_2] : memref<100x6xf32, #tpu.memory_space<vmem>>, vector<100x6xf32>
    %cst = arith.constant dense<0.000000e+00> : vector<12x6xf32>
    %2 = tpu.matmul %0, %1, %cst {dimension_numbers = #tpu.dot_dimension_numbers<[1], [0], [0], [1], [0, 0, 1, 1], [], []>} : vector<12x100xf32>, vector<100x6xf32>, vector<12x6xf32> -> vector<12x6xf32>
    %c0_3 = arith.constant 0 : index
    %3 = memref.load %arg1[%c0_3] : memref<1xf32, #tpu.memory_space<smem>>
    %4 = vector.broadcast %3 : f32 to vector<12x6xf32>
    %5 = arith.addf %2, %4 : vector<12x6xf32>
    %6 = math.tanh %5 : vector<12x6xf32>
    %c0_4 = arith.constant 0 : index
    %c0_5 = arith.constant 0 : index
    %7 = vector.load %arg4[%c0_4, %c0_5] : memref<12x6xf32, #tpu.memory_space<vmem>>, vector<12x6xf32>
    tpu.vector_store %arg4[%c0_4, %c0_5], %6 {strides = array<i32>} : memref<12x6xf32, #tpu.memory_space<vmem>>, vector<12x6xf32>,
    return
  }
  func.func @transform_0(%arg0: i32) -> i32 {
    %c0_i32 = arith.constant 0 : i32
    %c0_i32_0 = arith.constant 0 : i32
    return %c0_i32 : i32
  }
  func.func @transform_1(%arg0: i32) -> (i32, i32) {
    %c0_i32 = arith.constant 0 : i32
    %c0_i32_0 = arith.constant 0 : i32
    return %arg0, %c0_i32 : i32, i32
  }
  func.func @transform_2(%arg0: i32) -> (i32, i32) {
    %c0_i32 = arith.constant 0 : i32
    %c0_i32_0 = arith.constant 0 : i32
    %c0_i32_1 = arith.constant 0 : i32
    return %c0_i32, %c0_i32_0 : i32, i32
  }
  func.func @transform_3(%arg0: i32) -> (i32, i32) {
    %c0_i32 = arith.constant 0 : i32
    %c0_i32_0 = arith.constant 0 : i32
    return %arg0, %c0_i32 : i32, i32
  }
}

</mosaic_0001>

<llo_original>
// kernel: tpu_custom_call.1
$region0: #{tpu_custom_call.1}
  #allocation0 [shape = 'u32[]', space=smem, size = 0x4, offset = 0x4, fixed_abs, tag = 'smem constant byte address 0x4 - core index']
  #allocation1 [shape = 'u32[144,128]{1,0:T(1,128)}', space=vmem, size = 0x12000, scoped, tag = 'internal scratch']
  #allocation2 [shape = 'f32[1]{0:T(128)S(6)}', space=smem, size = 0x200, scoped, tag = 'scoped memory for tpu_custom_call.1']
  %s0 = inlined_call_operand.<no memory space> [shape: f32[1], index: 0, kind: input, shape index: {}]
  %s1 = inlined_call_operand.vmem [shape: f32[12,100], index: 1, kind: input, shape index: {}]
  %s2 = inlined_call_operand.vmem [shape: f32[100,6], index: 2, kind: input, shape index: {}]
  %s3 = inlined_call_operand.vmem [shape: f32[12,6], index: 3, kind: output, shape index: {}]
  %s4 = sld [smem:[#allocation0]]
  $region22: #{tpu_custom_call.1} parent=0
    _
  %s6 = ssub.s32 1, %s4
  %s7 = scalar_select 0, %s6, %s4
  %8 = sst [smem:[#allocation2]] %s0
  // Predicated region
  $region2: #{tpu_custom_call.1} parent=0 // pred_check
    _
  $region3: #{tpu_custom_call.1} parent=0 // pred_check_branch
    %10 = sbr.rel (0) target = $region5
  $region4: #{tpu_custom_call.1} parent=0 // pred_region
    _
  $region5: #{tpu_custom_call.1} parent=0 // pred_fallthru
    _
  // Predicated region
  $region6: #{tpu_custom_call.1} parent=0 // pred_check
    _
  $region7: #{tpu_custom_call.1} parent=0 // pred_check_branch
    %12 = sbr.rel (0) target = $region9
  $region8: #{tpu_custom_call.1} parent=0 // pred_region
    _
  $region9: #{tpu_custom_call.1} parent=0 // pred_fallthru
    _
  // Predicated region
  $region10: #{tpu_custom_call.1} parent=0 // pred_check
    _
  $region11: #{tpu_custom_call.1} parent=0 // pred_check_branch
    %14 = sbr.rel (0) target = $region13
  $region12: #{tpu_custom_call.1} parent=0 // pred_region
    _
  $region13: #{tpu_custom_call.1} parent=0 // pred_fallthru
    _
  %v15 = vld [vmem:[%s1] sm:$0xff]
  %v16 = vld [vmem:[%s1 + $0x8] sm:$0xf]
  %v17 = vld [vmem:[%s2] sm:$0xff]
  %v18 = vld [vmem:[%s2 + $0x8] sm:$0xff]
  %v19 = vld [vmem:[%s2 + $0x10] sm:$0xff]
  %v20 = vld [vmem:[%s2 + $0x18] sm:$0xff]
  %v21 = vld [vmem:[%s2 + $0x20] sm:$0xff]
  %v22 = vld [vmem:[%s2 + $0x28] sm:$0xff]
  %v23 = vld [vmem:[%s2 + $0x30] sm:$0xff]
  %v24 = vld [vmem:[%s2 + $0x38] sm:$0xff]
  %v25 = vld [vmem:[%s2 + $0x40] sm:$0xff]
  %v26 = vld [vmem:[%s2 + $0x48] sm:$0xff]
  %v27 = vld [vmem:[%s2 + $0x50] sm:$0xff]
  %v28 = vld [vmem:[%s2 + $0x58] sm:$0xff]
  %v29 = vld [vmem:[%s2 + $0x60] sm:$0xf]
  %s30 = sld [smem:[#allocation2]]
  %v31 = vstv %s30
  %vm32 = vcmask 818176
  %v34 = vsel %vm32, %v15, 0
  %v37 = vsel %vm32, %v16, 0
  %vm39 = vcmask 1043456
  %v41 = vsel %vm39, %v29, 0
  %43 = vmatprep.subr.mxu0 0.0
  %44 = vmatpush1.msra.mxu0 %v17
  %45 = vmatprep.subr.mxu0 0.0
  %46 = vmatpush1.msra.mxu0 %v18
  %47 = vmatprep.subr.mxu0 0.0
  %48 = vmatpush1.msra.mxu0 %v19
  %49 = vmatprep.subr.mxu0 0.0
  %50 = vmatpush1.msra.mxu0 %v20
  %51 = vmatprep.subr.mxu0 0.0
  %52 = vmatpush1.msra.mxu0 %v21
  %53 = vmatprep.subr.mxu0 0.0
  %54 = vmatpush1.msra.mxu0 %v22
  %55 = vmatprep.subr.mxu0 0.0
  %56 = vmatpush1.msra.mxu0 %v23
  %57 = vmatprep.subr.mxu0 0.0
  %58 = vmatpush1.msra.mxu0 %v24
  %59 = vmatprep.subr.mxu0 0.0
  %60 = vmatpush1.msra.mxu0 %v25
  %61 = vmatprep.subr.mxu0 0.0
  %62 = vmatpush1.msra.mxu0 %v26
  %63 = vmatprep.subr.mxu0 0.0
  %64 = vmatpush1.msra.mxu0 %v27
  %65 = vmatprep.subr.mxu0 0.0
  %66 = vmatpush1.msra.mxu0 %v28
  %67 = vmatprep.subr.mxu0 0.0
  %68 = vmatpush1.msra.mxu0 %v41
  %69 = vmatprep.subr.mxu0 0.0
  %70 = vmatpush1.msra.mxu0 0.0
  %71 = vmatprep.subr.mxu0 0.0
  %72 = vmatpush1.msra.mxu0 0.0
  %73 = vmatprep.subr.mxu0 0.0
  %74 = vmatpush1.msra.mxu0 0.0
  %75 = vmatprep.subr.mxu0 0.0
  %76 = vmatpush1.msra.mxu0 0.0
  %77 = vmatprep.subr.mxu0 0.0
  %78 = vmatpush1.msra.mxu0 0.0
  %79 = vmatprep.subr.mxu0 0.0
  %80 = vmatpush1.msra.mxu0 0.0
  %81 = vmatprep.subr.mxu0 0.0
  %82 = vmatpush1.msra.mxu0 0.0
  %83 = vmatprep.subr.mxu0 0.0
  %84 = vmatpush1.msra.mxu0 0.0
  %85 = vmatprep.subr.mxu0 0.0
  %86 = vmatpush1.msra.mxu0 0.0
  %87 = vmatprep.subr.mxu0 0.0
  %88 = vmatpush1.msra.mxu0 0.0
  %89 = vmatprep.subr.mxu0 0.0
  %90 = vmatpush1.msra.mxu0 0.0
  %91 = vmatprep.subr.mxu0 0.0
  %92 = vmatpush1.msra.mxu0 0.0
  %93 = vmatprep.subr.mxu0 0.0
  %94 = vmatpush1.msra.mxu0 0.0
  %95 = vmatprep.subr.mxu0 0.0
  %96 = vmatpush1.msra.mxu0 0.0
  %97 = vmatprep.subr.mxu0 0.0
  %98 = vmatpush1.msra.mxu0 0.0
  %99 = vmatprep.subr.mxu0 0.0
  %100 = vmatpush1.msra.mxu0 0.0
  %101 = vmatprep.subr.mxu0 0.0
  %102 = vmatpush1.msra.mxu0 0.0
  %103 = vmatprep.subr.mxu0 0.0
  %104 = vmatpush1.msra.mxu0 0.0
  %105 = vmatprep.subr.mxu0 0.0
  %106 = vmatpush1.msra.mxu0 0.0
  %107 = vmatprep.mubr.f32.mxu0 0.0
  %108 = vmatmul.mubr.f32.gmra.mrb[0].mxu0 %v34
  %v109 = vpop.f32.mrb[0].mxu0
  %v110 = vadd.f32 %v31, %v109
  %v111 = vpop.f32.mrb[0].mxu0
  %112 = vmatprep.mubr.f32.mxu0 0.0
  %113 = vmatmul.mubr.f32.gmra.mrb[0].mxu0 %v37
  %v114 = vpop.f32.mrb[0].mxu0
  %v115 = vadd.f32 %v31, %v114
  %v116 = vpop.f32.mrb[0].mxu0
  %117 = vdwg.mxu0
  %v118 = vtanh.pop %v110
  %v119 = vtanh.pop %v115
  %vm120 = vcmask 48128
  %121 = vst.msk [vmem:[%s3] sm:$0xff] %vm120, %v118
  %vm122 = vcmask 44032
  %123 = vst.msk [vmem:[%s3 + $0x8] sm:$0xf] %vm122, %v119
  // Predicated region
  $region14: #{tpu_custom_call.1} parent=0 // pred_check
    _
  $region15: #{tpu_custom_call.1} parent=0 // pred_check_branch
    %125 = sbr.rel (0) target = $region17
  $region16: #{tpu_custom_call.1} parent=0 // pred_region
    _
  $region17: #{tpu_custom_call.1} parent=0 // pred_fallthru
    _
  // Predicated region
  $region18: #{tpu_custom_call.1} parent=0 // pred_check
    _
  $region19: #{tpu_custom_call.1} parent=0 // pred_check_branch
    %127 = sbr.rel (0) target = $region21
  $region20: #{tpu_custom_call.1} parent=0 // pred_region
    _
  $region21: #{tpu_custom_call.1} parent=0 // pred_fallthru
    _

</llo_original>
